<compile_context>
chip_gen: v6e
topology: v6e:2x2x1
jax: 0.10.0
libtpu: 0.0.40
codegen_flags: <defaults>
</compile_context>

<pallas_src>
import math
import functools

import jax
import jax.numpy as jnp
from jax.experimental import pallas as pl
from jax.experimental.pallas import tpu as pltpu


def _pe_add_kernel(emb_ref, pe_ref, out_ref, *, scale):
    # emb_ref/out_ref: (B, ts, Df) | (1, ts, Df) | (ts, Df)
    # pe_ref:          (ts, Df)                  | (1, Df)
    # Broadcasting rules line pe up with the trailing dims of emb in all cases.
    emb = emb_ref[...].astype(jnp.float32)
    pe = pe_ref[...].astype(jnp.float32)
    out_ref[...] = (emb * scale + pe).astype(out_ref.dtype)


def make_positional_encoding_table(dim, max_len=5000):
    """Deterministic pe buffer, identical to the PyTorch __init__ (even dim)."""
    position = jnp.arange(0, max_len, dtype=jnp.float32)[:, None]            # (L, 1)
    div_term = jnp.exp(
        jnp.arange(0, dim, 2, dtype=jnp.float32) * -(math.log(10000.0) / dim)
    )                                                                        # (D/2,)
    pe = jnp.zeros((max_len, dim), dtype=jnp.float32)
    pe = pe.at[:, 0::2].set(jnp.sin(position * div_term))
    pe = pe.at[:, 1::2].set(jnp.cos(position * div_term))
    return pe                                                                # (max_len, D) f32


def _live_vmem_budget_bytes():
    """Budget for the double-buffered emb+out+pe working set, per generation."""
    try:
        kind = jax.devices()[0].device_kind.lower()
    except Exception:
        kind = ""
    if "v6" in kind or "v7" in kind:
        return 24 << 20   # under the 32 MiB scoped default; safe on v7x's 64 MiB physical VMEM
    return 12 << 20       # v5e scoped-VMEM default is 16 MiB


def _row_pack(itemsize):
    """Sublane packing granularity: 8 rows (32-bit), 16 (bf16), 32 (8-bit)."""
    return 8 * max(1, 4 // int(itemsize))


def _choose_row_tile(n_rows, bytes_per_row, pack, live_budget):
    """Largest row tile (full extent, or a multiple of `pack`) whose
    double-buffered working set stays under `live_budget`."""
    if 2 * n_rows * bytes_per_row <= live_budget:
        return n_rows
    ts = (live_budget // (2 * max(bytes_per_row, 1))) // pack * pack
    ts = max(ts, pack)
    return min(ts, n_rows)


class PositionalEncodingPallas:
    def __init__(self, dropout, dim, max_len=5000):
        self.dim = dim
        self.max_len = max_len
        self.dropout_p = dropout                              # identity in eval mode
        self.pe = make_positional_encoding_table(dim, max_len)  # (max_len, dim) f32

    def __call__(self, emb, step=None):
        """emb: (B, S, D). Returns (B, S, D) with the same dtype as emb."""
        B, S, D = emb.shape
        assert D == self.dim
        itemsize = jnp.dtype(emb.dtype).itemsize
        scale = float(math.sqrt(self.dim))
        pack = _row_pack(itemsize)
        budget = _live_vmem_budget_bytes()

        # Fold factor that makes the folded last dim a multiple of 128.
        fold = 128 // math.gcd(D, 128)
        Df = D * fold

        kernel = functools.partial(_pe_add_kernel, scale=scale)

        # `if step:` mirrors the original PyTorch module exactly
        # (step == 0 or None falls through to the full-sequence branch).
        if step:
            return self._step_path(emb, step, fold, Df, itemsize, pack, budget, kernel)
        out = self._seq_path(emb, fold, Df, itemsize, pack, budget, kernel)
        # TODO(synk): training-mode dropout (p=self.dropout_p) not applied.
        return out

    # ----- decode / step path: dense 2-D row tiles over (B*S, D) ------------
    def _step_path(self, emb, step, fold, Df, itemsize, pack, budget, kernel):
        B, S, D = emb.shape
        dtype = emb.dtype
        N = B * S
        emb2d = emb.reshape(N, D)

        N_pad = pl.cdiv(N, fold) * fold
        if N_pad != N:
            emb2d = jnp.pad(emb2d, ((0, N_pad - N), (0, 0)))
        Nf = N_pad // fold
        emb_f = emb2d.reshape(Nf, Df)

        # One f32 pe row, repeated only across the lane fold; broadcast over
        # rows happens inside the kernel.
        pe_in = jnp.tile(self.pe[step][None, :], (1, fold))               # (1, Df) f32

        bytes_per_row = 2 * Df * itemsize                                 # emb + out (pe negligible)
        ts = _choose_row_tile(Nf, bytes_per_row, pack, budget)
        n_tiles = pl.cdiv(Nf, ts)

        cost = pl.CostEstimate(
            flops=2 * N * D, transcendentals=0,
            bytes_accessed=2 * N * D * itemsize + Df * 4,
        )

        out = pl.pallas_call(
            kernel,
            out_shape=jax.ShapeDtypeStruct((Nf, Df), dtype),
            grid_spec=pltpu.PrefetchScalarGridSpec(
                num_scalar_prefetch=0,
                grid=(n_tiles,),
                in_specs=[
                    pl.BlockSpec((ts, Df), lambda r: (r, 0)),             # emb rows
                    pl.BlockSpec((1, Df), lambda r: (0, 0)),              # shared pe row
                ],
                out_specs=pl.BlockSpec((ts, Df), lambda r: (r, 0)),
            ),
            compiler_params=pltpu.CompilerParams(dimension_semantics=("parallel",)),
            cost_estimate=cost,
        )(emb_f, pe_in)

        out = out.reshape(N_pad, D)[:N]
        return out.reshape(B, S, D)

    # ----- full-sequence path ------------------------------------------------
    def _seq_path(self, emb, fold, Df, itemsize, pack, budget, kernel):
        B, S, D = emb.shape
        dtype = emb.dtype

        # Pad S to a multiple of the fold factor: keeps the folded last dim
        # lane-dense instead of falling back to masked partial stores.
        S_pad = pl.cdiv(S, fold) * fold
        assert S_pad <= self.max_len, "sequence longer than positional-encoding table"
        emb_p = emb if S_pad == S else jnp.pad(emb, ((0, 0), (0, S_pad - S), (0, 0)))
        Sf = S_pad // fold
        emb_f = emb_p.reshape(B, Sf, Df)

        pe_in = self.pe[:S_pad].reshape(Sf, Df)                           # f32, shared across batch
        pe_row_bytes = Df * 4

        cost = pl.CostEstimate(
            flops=2 * B * S * D, transcendentals=0,
            bytes_accessed=2 * B * S * D * itemsize + S * D * 4,
        )

        whole_batch_row_bytes = 2 * B * Df * itemsize + pe_row_bytes
        if 2 * min(pack, Sf) * whole_batch_row_bytes <= budget:
            # Whole-batch blocks: single grid axis over sequence tiles; pe is
            # fetched once per seq tile; single large parallel axis for v7x.
            ts = _choose_row_tile(Sf, whole_batch_row_bytes, pack, budget)
            n_tiles = pl.cdiv(Sf, ts)
            out = pl.pallas_call(
                kernel,
                out_shape=jax.ShapeDtypeStruct((B, Sf, Df), dtype),
                grid_spec=pltpu.PrefetchScalarGridSpec(
                    num_scalar_prefetch=0,
                    grid=(n_tiles,),
                    in_specs=[
                        pl.BlockSpec((B, ts, Df), lambda s: (0, s, 0)),   # emb tile (all batches)
                        pl.BlockSpec((ts, Df), lambda s: (s, 0)),         # shared pe tile
                    ],
                    out_specs=pl.BlockSpec((B, ts, Df), lambda s: (0, s, 0)),
                ),
                compiler_params=pltpu.CompilerParams(dimension_semantics=("parallel",)),
                cost_estimate=cost,
            )(emb_f, pe_in)
        else:
            # Large-batch fallback: batch innermost (pe block index constant
            # across it -> pe stays resident); both axes parallel so v7x's
            # second TensorCore is used even when n_tiles == 1.
            per_batch_row_bytes = 2 * Df * itemsize + pe_row_bytes
            ts = _choose_row_tile(Sf, per_batch_row_bytes, pack, budget)
            n_tiles = pl.cdiv(Sf, ts)
            out = pl.pallas_call(
                kernel,
                out_shape=jax.ShapeDtypeStruct((B, Sf, Df), dtype),
                grid_spec=pltpu.PrefetchScalarGridSpec(
                    num_scalar_prefetch=0,
                    grid=(n_tiles, B),
                    in_specs=[
                        pl.BlockSpec((1, ts, Df), lambda s, b: (b, s, 0)),
                        pl.BlockSpec((ts, Df), lambda s, b: (s, 0)),
                    ],
                    out_specs=pl.BlockSpec((1, ts, Df), lambda s, b: (b, s, 0)),
                ),
                compiler_params=pltpu.CompilerParams(
                    dimension_semantics=("parallel", "parallel")),
                cost_estimate=cost,
            )(emb_f, pe_in)

        out = out.reshape(B, S_pad, D)
        if S_pad != S:
            out = out[:, :S]
        return out


def _reference(emb, pe, dim, step=None):
    emb = emb.astype(jnp.float32) * math.sqrt(dim)
    if step:
        return emb + pe[step][None, None, :]
    return emb + pe[None, : emb.shape[1]]


if __name__ == "__main__":
    key = jax.random.PRNGKey(0)

    # Case 1: D < 128 (seq->lane fold), full-sequence branch, whole-batch blocks.
    B, S, D = 2, 8, 32
    emb = jax.random.normal(key, (B, S, D), dtype=jnp.float32)
    module = PositionalEncodingPallas(dropout=0.1, dim=D, max_len=5000)
    out = jax.block_until_ready(module(emb))
    ref = _reference(emb, module.pe, D)
    assert jnp.allclose(out, ref, atol=1e-5, rtol=1e-5), "mismatch (seq path, D=32)"

    # Case 1b: decode-style step path (dense 2-D row tiles, pe row broadcast in-kernel).
    out_step = jax.block_until_ready(module(emb, step=3))
    ref_step = _reference(emb, module.pe, D, step=3)
    assert jnp.allclose(out_step, ref_step, atol=1e-5, rtol=1e-5), "mismatch (step path)"

    # Case 1c: odd S with D < 128 -> exercises the S-padding (no fold fallback).
    emb_odd = jax.random.normal(jax.random.PRNGKey(2), (2, 7, D), dtype=jnp.float32)
    out_odd = jax.block_until_ready(module(emb_odd))
    ref_odd = _reference(emb_odd, module.pe, D)
    assert jnp.allclose(out_odd, ref_odd, atol=1e-5, rtol=1e-5), "mismatch (odd S path)"

    # Case 1d: decode with B*S not a multiple of the fold factor (row padding).
    emb_dec = jax.random.normal(jax.random.PRNGKey(3), (3, 1, D), dtype=jnp.float32)
    out_dec = jax.block_until_ready(module(emb_dec, step=5))
    ref_dec = _reference(emb_dec, module.pe, D, step=5)
    assert jnp.allclose(out_dec, ref_dec, atol=1e-5, rtol=1e-5), "mismatch (decode pad path)"

    # Case 2: lane-dense D (no fold), full-sequence path.
    B2, S2, D2 = 2, 16, 128
    emb2 = jax.random.normal(jax.random.PRNGKey(1), (B2, S2, D2), dtype=jnp.float32)
    module2 = PositionalEncodingPallas(dropout=0.1, dim=D2, max_len=5000)
    out2 = jax.block_until_ready(module2(emb2))
    ref2 = _reference(emb2, module2.pe, D2)
    assert jnp.allclose(out2, ref2, atol=1e-5, rtol=1e-5), "mismatch (seq path, D=128)"

    # Case 3: bf16 activations — pe stays f32, compute in f32, cast at store.
    emb3 = jax.random.normal(jax.random.PRNGKey(4), (2, 8, D2), dtype=jnp.bfloat16)
    out3 = jax.block_until_ready(module2(emb3))
    ref3 = _reference(emb3, module2.pe, D2).astype(jnp.bfloat16)
    assert jnp.allclose(out3.astype(jnp.float32), ref3.astype(jnp.float32),
                        atol=2e-1, rtol=2e-2), "mismatch (bf16 path)"

    print("KERNEL_OK")
</pallas_src>

<mosaic_0001>
module attributes {stable_mosaic.version = 11 : i64} {
  func.func @_pe_add_kernel(%arg0: i32, %arg1: memref<2x2x128xf32, #tpu.memory_space<vmem>>, %arg2: memref<2x128xf32, #tpu.memory_space<vmem>>, %arg3: memref<2x2x128xf32, #tpu.memory_space<vmem>>) attributes {dimension_semantics = [#tpu.dimension_semantics<parallel>], iteration_bounds = array<i64: 1>, scalar_prefetch = 0 : i64, scratch_operands = 0 : i64, tpu.core_type = #tpu.core_type<tc>, window_params = [{transform_indices = @transform_0, window_bounds = array<i64: 2, 2, 128>}, {transform_indices = @transform_1, window_bounds = array<i64: 2, 128>}, {transform_indices = @transform_2, window_bounds = array<i64: 2, 2, 128>}]} {
    %c0 = arith.constant 0 : index
    %c0_0 = arith.constant 0 : index
    %c0_1 = arith.constant 0 : index
    %0 = vector.load %arg1[%c0, %c0_0, %c0_1] : memref<2x2x128xf32, #tpu.memory_space<vmem>>, vector<2x2x128xf32>
    %c0_2 = arith.constant 0 : index
    %c0_3 = arith.constant 0 : index
    %1 = vector.load %arg2[%c0_2, %c0_3] : memref<2x128xf32, #tpu.memory_space<vmem>>, vector<2x128xf32>
    %cst = arith.constant 5.65685415 : f32
    %2 = vector.broadcast %cst : f32 to vector<2x2x128xf32>
    %3 = arith.mulf %0, %2 : vector<2x2x128xf32>
    %4 = vector.shape_cast %1 : vector<2x128xf32> to vector<1x2x128xf32>
    %5 = vector.broadcast %4 : vector<1x2x128xf32> to vector<2x2x128xf32>
    %6 = arith.addf %3, %5 : vector<2x2x128xf32>
    %c0_4 = arith.constant 0 : index
    %c0_5 = arith.constant 0 : index
    %c0_6 = arith.constant 0 : index
    %7 = vector.load %arg3[%c0_4, %c0_5, %c0_6] : memref<2x2x128xf32, #tpu.memory_space<vmem>>, vector<2x2x128xf32>
    tpu.vector_store %arg3[%c0_4, %c0_5, %c0_6], %6 {strides = array<i32>} : memref<2x2x128xf32, #tpu.memory_space<vmem>>, vector<2x2x128xf32>,
    return
  }
  func.func @transform_0(%arg0: i32) -> (i32, i32, i32) {
    %c0_i32 = arith.constant 0 : i32
    %c0_i32_0 = arith.constant 0 : i32
    %c0_i32_1 = arith.constant 0 : i32
    return %c0_i32, %arg0, %c0_i32_0 : i32, i32, i32
  }
  func.func @transform_1(%arg0: i32) -> (i32, i32) {
    %c0_i32 = arith.constant 0 : i32
    %c0_i32_0 = arith.constant 0 : i32
    return %arg0, %c0_i32 : i32, i32
  }
  func.func @transform_2(%arg0: i32) -> (i32, i32, i32) {
    %c0_i32 = arith.constant 0 : i32
    %c0_i32_0 = arith.constant 0 : i32
    %c0_i32_1 = arith.constant 0 : i32
    return %c0_i32, %arg0, %c0_i32_0 : i32, i32, i32
  }
}

</mosaic_0001>

<llo_original>
// kernel: tpu_custom_call.1
$region0: #{tpu_custom_call.1}
  #allocation0 [shape = 'u32[]', space=smem, size = 0x4, offset = 0x4, fixed_abs, tag = 'smem constant byte address 0x4 - core index']
  #allocation1 [shape = 'u32[144,128]{1,0:T(1,128)}', space=vmem, size = 0x12000, scoped, tag = 'internal scratch']
  %s0 = inlined_call_operand.hbm [shape: f32[2,2,128], index: 0, kind: input, shape index: {}]
  %s1 = inlined_call_operand.hbm [shape: f32[2,128], index: 1, kind: input, shape index: {}]
  %s2 = inlined_call_operand.hbm [shape: f32[2,2,128], index: 2, kind: output, shape index: {}]
  %s3 = sld [smem:[#allocation0]]
  $region26: #{tpu_custom_call.1} parent=0
    _
  %s5 = ssub.s32 1, %s3
  %s6 = scalar_select 0, %s5, %s3
  $region1: #{tpu_custom_call.1} parent=0
    #allocation2 [shape = 'u8[2048]{0}', space=vmem, size = 0x800, scoped, tag = 'input window, operand 0, single buffered']
    #allocation3 [shape = 's32[1]{0}', space=sflag, size = 0x4, scoped, tag = 'scoped memory for tpu_custom_call.1']
    #allocation4 [shape = 's32[1]{0}', space=sflag, size = 0x4, scoped, tag = 'scoped memory for tpu_custom_call.1']
    #allocation5 [shape = 'u8[1024]{0}', space=vmem, size = 0x400, scoped, tag = 'input window, operand 1, single buffered']
    #allocation6 [shape = 's32[1]{0}', space=sflag, size = 0x4, scoped, tag = 'scoped memory for tpu_custom_call.1']
    #allocation7 [shape = 'u8[2048]{0}', space=vmem, size = 0x800, scoped, tag = 'output window, operand 0, single buffered']
    %7 = vsyncpa [#allocation3], 0
    %8 = vsyncpa [#allocation6], 0
    %9 = vsyncpa [#allocation4], 0
    // Predicated region
    $region2: #{tpu_custom_call.1} parent=1 // pred_check
      _
    $region3: #{tpu_custom_call.1} parent=1 // pred_check_branch
      %11 = sbr.rel (0) target = $region5
    $region4: #{tpu_custom_call.1} parent=1 // pred_region
      %s13 = ssub.s32 64, 64
      %14 = vsyncadd [#allocation3], %s13
      %s15 = sshll.u32 [#allocation2], 4
      %s16 = int_to_ptr.vmem [resolvable:$true] %s15
      %21 = dma.hbm_to_vmem [thread:$0]  %s0, 64, %s16, [#allocation3], 32, 32, 2
    $region5: #{tpu_custom_call.1} parent=1 // pred_fallthru
      _
    // Predicated region
    $region6: #{tpu_custom_call.1} parent=1 // pred_check
      _
    $region7: #{tpu_custom_call.1} parent=1 // pred_check_branch
      %23 = sbr.rel (0) target = $region9
    $region8: #{tpu_custom_call.1} parent=1 // pred_region
      %s25 = ssub.s32 32, 32
      %26 = vsyncadd [#allocation6], %s25
      %s28 = sshll.u32 [#allocation5], 4
      %s29 = int_to_ptr.vmem [resolvable:$true] %s28
      %31 = dma.hbm_to_vmem [thread:$0]  %s1, 32, %s29, [#allocation6]
    $region9: #{tpu_custom_call.1} parent=1 // pred_fallthru
      _
    // Predicated region
    $region10: #{tpu_custom_call.1} parent=1 // pred_check
      _
    $region11: #{tpu_custom_call.1} parent=1 // pred_check_branch
      %33 = sbr.rel (0) target = $region13
    $region12: #{tpu_custom_call.1} parent=1 // pred_region
      %34 = dma.done [#allocation3], 64
    $region13: #{tpu_custom_call.1} parent=1 // pred_fallthru
      _
    // Predicated region
    $region14: #{tpu_custom_call.1} parent=1 // pred_check
      _
    $region15: #{tpu_custom_call.1} parent=1 // pred_check_branch
      %36 = sbr.rel (0) target = $region17
    $region16: #{tpu_custom_call.1} parent=1 // pred_region
      %37 = dma.done [#allocation6], 32
    $region17: #{tpu_custom_call.1} parent=1 // pred_fallthru
      _
    %v38 = vld [vmem:[#allocation2] sm:$0x3]
    %v39 = vld [vmem:[#allocation2 + $0x2] sm:$0x3]
    %v40 = vld [vmem:[#allocation5] sm:$0x3]
    %v41 = vmul.f32 %v38, 5.656854
    %v42 = vmul.f32 %v39, 5.656854
    %v43 = vadd.f32 %v41, %v40
    %v44 = vadd.f32 %v42, %v40
    %45 = vst [vmem:[#allocation7] sm:$0x3] %v43
    %46 = vst [vmem:[#allocation7 + $0x2] sm:$0x3] %v44
    // Predicated region
    $region18: #{tpu_custom_call.1} parent=1 // pred_check
      _
    $region19: #{tpu_custom_call.1} parent=1 // pred_check_branch
      %48 = sbr.rel (0) target = $region21
    $region20: #{tpu_custom_call.1} parent=1 // pred_region
      %s50 = ssub.s32 64, 64
      %51 = vsyncadd [#allocation4], %s50
      %s52 = sshll.u32 [#allocation7], 4
      %s53 = int_to_ptr.vmem [resolvable:$true] %s52
      %58 = dma.vmem_to_hbm [thread:$0]  %s53, 64, %s2, [#allocation4], 32, 32, 2
    $region21: #{tpu_custom_call.1} parent=1 // pred_fallthru
      _
    // Predicated region
    $region22: #{tpu_custom_call.1} parent=1 // pred_check
      _
    $region23: #{tpu_custom_call.1} parent=1 // pred_check_branch
      %60 = sbr.rel (0) target = $region25
    $region24: #{tpu_custom_call.1} parent=1 // pred_region
      %61 = dma.done [#allocation4], 64
    $region25: #{tpu_custom_call.1} parent=1 // pred_fallthru
      _
    %62 = vsyncpa [#allocation3], 1
    %63 = vsyncpa [#allocation6], 1
    %64 = vsyncpa [#allocation4], 1

</llo_original>
